<compile_context>
chip_gen: v7x
topology: tpu7x:2x2x1
jax: 0.10.0
libtpu: 0.0.40
codegen_flags: <defaults>
</compile_context>

<pallas_src>
import numpy as np
import jax
import jax.numpy as jnp
from jax.experimental import pallas as pl
from jax.experimental.pallas import tpu as pltpu


def _make_kernel(weights, num_cls, rows, trows, needs_row_mask):
    """Builds the per-scale kernel.

    Block shapes seen by the kernel:
      x_ref  : (1, num_cls, trows, 128)  logits (native dtype)
      t_ref  : (1, trows, 128)           int32 targets in [0, C] (0 == ignore)
      num_ref: (1, 1, 128)  f32          per-image weighted-CE partial sums
      den_ref: (1, 1, 128)  f32          per-image weight-denominator partials
    """
    weights = tuple(float(w) for w in weights)

    def kernel(x_ref, t_ref, num_ref, den_ref):
        j = pl.program_id(1)

        @pl.when(j == 0)
        def _():
            num_ref[...] = jnp.zeros_like(num_ref)
            den_ref[...] = jnp.zeros_like(den_ref)

        t = t_ref[0, :, :]                                      # (trows, 128)
        if needs_row_mask:
            # tail tile overhangs the pixel rows: force OOB rows to "ignore"
            row = jax.lax.broadcasted_iota(jnp.int32, t.shape, 0) + j * trows
            t = jnp.where(row < rows, t, 0)

        # per-class dense (trows, 128) slabs
        xs = [x_ref[0, c, :, :].astype(jnp.float32) for c in range(num_cls)]

        # log-sum-exp over classes, statically unrolled, pure elementwise
        m = xs[0]
        for c in range(1, num_cls):
            m = jnp.maximum(m, xs[c])
        s = jnp.exp(xs[0] - m)
        for c in range(1, num_cls):
            s = s + jnp.exp(xs[c] - m)
        lse = m + jnp.log(s)

        # gather target logit and per-pixel class weight via unrolled selects
        xt = jnp.zeros_like(m)
        wt = jnp.zeros_like(m)
        for c in range(num_cls):
            sel = t == (c + 1)
            xt = jnp.where(sel, xs[c], xt)
            wt = jnp.where(sel, jnp.float32(weights[c]), wt)

        # weighted CE; exactly 0 for ignored / padded / masked pixels (wt == 0)
        loss = jnp.where(wt > 0.0, wt * (lse - xt), 0.0)

        # fold rows -> one lane-dense (1,128) vector, accumulate into the
        # resident per-image output block (single tiny reduce in the wrapper)
        num_ref[...] += jnp.sum(loss, axis=0, keepdims=True)[None]
        den_ref[...] += jnp.sum(wt, axis=0, keepdims=True)[None]

    return kernel


_TILE_BUDGET_BYTES = 8 * 1024 * 1024   # double-buffered input blocks per grid step


def _pick_trows(rows, num_cls, itemsize):
    """Pick the pixel-row tile: as large as the VMEM budget allows."""
    per_row = 2 * 128 * (num_cls * itemsize + 4)   # 2x buffers * (logits + i32 targets)
    cap = max(16, min(2048, (_TILE_BUDGET_BYTES // per_row) // 16 * 16))
    return rows if rows <= cap else cap


def _ce_loss_one_scale(logits_nchw, targets_nhw, weights):
    n, num_cls, h, w = logits_nchw.shape
    assert len(weights) == num_cls
    hw = h * w

    x = logits_nchw.reshape(n, num_cls, hw)            # free reshape, NCHW-native
    t = targets_nhw.reshape(n, hw).astype(jnp.int32)

    hwp = ((hw + 127) // 128) * 128
    if hwp != hw:
        # pad pixel axis to a lane multiple; padded targets==0 are ignored exactly
        x = jnp.pad(x, ((0, 0), (0, 0), (0, hwp - hw)))
        t = jnp.pad(t, ((0, 0), (0, hwp - hw)))

    rows = hwp // 128
    x = x.reshape(n, num_cls, rows, 128)               # free reshape
    t = t.reshape(n, rows, 128)

    trows = _pick_trows(rows, num_cls, x.dtype.itemsize)
    n_jt = pl.cdiv(rows, trows)
    needs_row_mask = (n_jt * trows != rows)

    kernel = _make_kernel(weights, num_cls, rows, trows, needs_row_mask)

    num_out, den_out = pl.pallas_call(
        kernel,
        out_shape=(jax.ShapeDtypeStruct((n, 1, 128), jnp.float32),
                   jax.ShapeDtypeStruct((n, 1, 128), jnp.float32)),
        grid_spec=pltpu.PrefetchScalarGridSpec(
            num_scalar_prefetch=0,
            grid=(n, n_jt),
            in_specs=[
                pl.BlockSpec((1, num_cls, trows, 128), lambda i, j: (i, 0, j, 0)),
                pl.BlockSpec((1, trows, 128), lambda i, j: (i, j, 0)),
            ],
            out_specs=(
                pl.BlockSpec((1, 1, 128), lambda i, j: (i, 0, 0)),
                pl.BlockSpec((1, 1, 128), lambda i, j: (i, 0, 0)),
            ),
        ),
        compiler_params=pltpu.CompilerParams(
            dimension_semantics=("parallel", "arbitrary"),
            vmem_limit_bytes=32 * 1024 * 1024,
        ),
    )(x, t)

    # tiny final reductions (one (N,1,128) slab per accumulator)
    return jnp.sum(num_out) / jnp.sum(den_out)


def cross_entropy_loss_2d(inputs_scales, targets_scales, weight):
    """Equivalent of CrossEntropyLoss2d.forward (sum over scales)."""
    # weight is an __init__-time constant in the original module -> static here
    weights = tuple(float(v) for v in np.asarray(weight, dtype=np.float32))
    total = jnp.float32(0.0)
    for logits, targets in zip(inputs_scales, targets_scales):
        total = total + _ce_loss_one_scale(logits, targets, weights)
    return total


# ----------------------- pure-JAX reference (for checking) -----------------------
def _ref_one_scale(logits_nchw, targets_nhw, weight):
    n, c, h, w_ = logits_nchw.shape
    x = jnp.transpose(logits_nchw, (0, 2, 3, 1)).reshape(-1, c).astype(jnp.float32)
    t = targets_nhw.reshape(-1).astype(jnp.int32) - 1
    wgt = jnp.asarray(weight, jnp.float32)
    logp = jax.nn.log_softmax(x, axis=-1)
    valid = t >= 0
    tc = jnp.clip(t, 0, c - 1)
    per = -wgt[tc] * jnp.take_along_axis(logp, tc[:, None], axis=1)[:, 0]
    per = jnp.where(valid, per, 0.0)
    den = jnp.sum(jnp.where(valid, wgt[tc], 0.0))
    return jnp.sum(per) / den


def _ref(inputs_scales, targets_scales, weight):
    return sum(_ref_one_scale(x, t, weight) for x, t in zip(inputs_scales, targets_scales))


if __name__ == "__main__":
    key = jax.random.PRNGKey(0)

    # class weights (module __init__ arg); C = 4 classes in logits,
    # target values live in [0, C] where 0 means ignore (num_classes = C + 1).
    weight = jnp.array([0.5, 1.0, 1.5, 2.0], dtype=jnp.float32)
    C = weight.shape[0]

    k1, k2, k3, k4 = jax.random.split(key, 4)
    # two scales, NCHW logits + integer targets
    x1 = jax.random.normal(k1, (2, C, 16, 16), dtype=jnp.float32)
    t1 = jax.random.randint(k2, (2, 16, 16), 0, C + 1, dtype=jnp.int32)
    x2 = jax.random.normal(k3, (2, C, 8, 8), dtype=jnp.float32)
    t2 = jax.random.randint(k4, (2, 8, 8), 0, C + 1, dtype=jnp.int32)

    inputs_scales = [x1, x2]
    targets_scales = [t1, t2]

    out = cross_entropy_loss_2d(inputs_scales, targets_scales, weight)
    out = jax.block_until_ready(out)

    ref = jax.block_until_ready(_ref(inputs_scales, targets_scales, weight))
    assert jnp.allclose(out, ref, rtol=1e-5, atol=1e-5), (out, ref)

    print("KERNEL_OK")
</pallas_src>

<mosaic_0001>
module attributes {stable_mosaic.version = 11 : i64} {
  func.func @kernel(%arg0: i32, %arg1: i32, %arg2: memref<1x4x2x128xf32, #tpu.memory_space<vmem>>, %arg3: memref<1x2x128xi32, #tpu.memory_space<vmem>>, %arg4: memref<1x1x128xf32, #tpu.memory_space<vmem>>, %arg5: memref<1x1x128xf32, #tpu.memory_space<vmem>>) attributes {dimension_semantics = [#tpu.dimension_semantics<parallel>, #tpu.dimension_semantics<arbitrary>], iteration_bounds = array<i64: 2, 1>, scalar_prefetch = 0 : i64, scratch_operands = 0 : i64, tpu.core_type = #tpu.core_type<tc>, window_params = [{transform_indices = @transform_0, window_bounds = array<i64: 1, 4, 2, 128>}, {transform_indices = @transform_1, window_bounds = array<i64: 1, 2, 128>}, {transform_indices = @transform_2, window_bounds = array<i64: 1, 1, 128>}, {transform_indices = @transform_3, window_bounds = array<i64: 1, 1, 128>}]} {
    %c0_i32 = arith.constant 0 : i32
    %0 = arith.cmpi eq, %arg1, %c0_i32 : i32
    %1 = arith.extui %0 : i1 to i32
    %c0_i32_0 = arith.constant 0 : i32
    %2 = arith.cmpi ne, %1, %c0_i32_0 : i32
    scf.if %2 {
      %cst_37 = arith.constant 0.000000e+00 : f32
      %69 = vector.broadcast %cst_37 : f32 to vector<1x1x128xf32>
      %c0_38 = arith.constant 0 : index
      %c0_39 = arith.constant 0 : index
      %c0_40 = arith.constant 0 : index
      %70 = vector.load %arg4[%c0_38, %c0_39, %c0_40] : memref<1x1x128xf32, #tpu.memory_space<vmem>>, vector<1x1x128xf32>
      tpu.vector_store %arg4[%c0_38, %c0_39, %c0_40], %69 {strides = array<i32>} : memref<1x1x128xf32, #tpu.memory_space<vmem>>, vector<1x1x128xf32>,
      %cst_41 = arith.constant 0.000000e+00 : f32
      %71 = vector.broadcast %cst_41 : f32 to vector<1x1x128xf32>
      %c0_42 = arith.constant 0 : index
      %c0_43 = arith.constant 0 : index
      %c0_44 = arith.constant 0 : index
      %72 = vector.load %arg5[%c0_42, %c0_43, %c0_44] : memref<1x1x128xf32, #tpu.memory_space<vmem>>, vector<1x1x128xf32>
      tpu.vector_store %arg5[%c0_42, %c0_43, %c0_44], %71 {strides = array<i32>} : memref<1x1x128xf32, #tpu.memory_space<vmem>>, vector<1x1x128xf32>,
    } else {
    }
    %c0 = arith.constant 0 : index
    %c0_1 = arith.constant 0 : index
    %c0_2 = arith.constant 0 : index
    %3 = vector.load %arg3[%c0, %c0_1, %c0_2] : memref<1x2x128xi32, #tpu.memory_space<vmem>>, vector<1x2x128xi32>
    %4 = vector.shape_cast %3 : vector<1x2x128xi32> to vector<2x128xi32>
    %c0_3 = arith.constant 0 : index
    %c0_4 = arith.constant 0 : index
    %c0_5 = arith.constant 0 : index
    %c0_6 = arith.constant 0 : index
    %5 = vector.load %arg2[%c0_3, %c0_4, %c0_5, %c0_6] : memref<1x4x2x128xf32, #tpu.memory_space<vmem>>, vector<1x1x2x128xf32>
    %6 = vector.shape_cast %5 : vector<1x1x2x128xf32> to vector<2x128xf32>
    %c0_7 = arith.constant 0 : index
    %c1 = arith.constant 1 : index
    %c0_8 = arith.constant 0 : index
    %c0_9 = arith.constant 0 : index
    %7 = vector.load %arg2[%c0_7, %c1, %c0_8, %c0_9] : memref<1x4x2x128xf32, #tpu.memory_space<vmem>>, vector<1x1x2x128xf32>
    %8 = vector.shape_cast %7 : vector<1x1x2x128xf32> to vector<2x128xf32>
    %c0_10 = arith.constant 0 : index
    %c2 = arith.constant 2 : index
    %c0_11 = arith.constant 0 : index
    %c0_12 = arith.constant 0 : index
    %9 = vector.load %arg2[%c0_10, %c2, %c0_11, %c0_12] : memref<1x4x2x128xf32, #tpu.memory_space<vmem>>, vector<1x1x2x128xf32>
    %10 = vector.shape_cast %9 : vector<1x1x2x128xf32> to vector<2x128xf32>
    %c0_13 = arith.constant 0 : index
    %c3 = arith.constant 3 : index
    %c0_14 = arith.constant 0 : index
    %c0_15 = arith.constant 0 : index
    %11 = vector.load %arg2[%c0_13, %c3, %c0_14, %c0_15] : memref<1x4x2x128xf32, #tpu.memory_space<vmem>>, vector<1x1x2x128xf32>
    %12 = vector.shape_cast %11 : vector<1x1x2x128xf32> to vector<2x128xf32>
    %13 = arith.maximumf %6, %8 : vector<2x128xf32>
    %14 = arith.maximumf %13, %10 : vector<2x128xf32>
    %15 = arith.maximumf %14, %12 : vector<2x128xf32>
    %16 = arith.subf %6, %15 : vector<2x128xf32>
    %17 = math.exp %16 : vector<2x128xf32>
    %18 = arith.subf %8, %15 : vector<2x128xf32>
    %19 = math.exp %18 : vector<2x128xf32>
    %20 = arith.addf %17, %19 : vector<2x128xf32>
    %21 = arith.subf %10, %15 : vector<2x128xf32>
    %22 = math.exp %21 : vector<2x128xf32>
    %23 = arith.addf %20, %22 : vector<2x128xf32>
    %24 = arith.subf %12, %15 : vector<2x128xf32>
    %25 = math.exp %24 : vector<2x128xf32>
    %26 = arith.addf %23, %25 : vector<2x128xf32>
    %27 = math.log %26 : vector<2x128xf32>
    %28 = arith.addf %15, %27 : vector<2x128xf32>
    %cst = arith.constant 0.000000e+00 : f32
    %29 = vector.broadcast %cst : f32 to vector<2x128xf32>
    %cst_16 = arith.constant 0.000000e+00 : f32
    %30 = vector.broadcast %cst_16 : f32 to vector<2x128xf32>
    %c1_i32 = arith.constant 1 : i32
    %31 = vector.broadcast %c1_i32 : i32 to vector<2x128xi32>
    %32 = arith.cmpi eq, %4, %31 : vector<2x128xi32>
    %33 = arith.select %32, %6, %29 : vector<2x128xi1>, vector<2x128xf32>
    %cst_17 = arith.constant 5.000000e-01 : f32
    %34 = vector.broadcast %cst_17 : f32 to vector<2x128xf32>
    %35 = arith.select %32, %34, %30 : vector<2x128xi1>, vector<2x128xf32>
    %c2_i32 = arith.constant 2 : i32
    %36 = vector.broadcast %c2_i32 : i32 to vector<2x128xi32>
    %37 = arith.cmpi eq, %4, %36 : vector<2x128xi32>
    %38 = arith.select %37, %8, %33 : vector<2x128xi1>, vector<2x128xf32>
    %cst_18 = arith.constant 1.000000e+00 : f32
    %39 = vector.broadcast %cst_18 : f32 to vector<2x128xf32>
    %40 = arith.select %37, %39, %35 : vector<2x128xi1>, vector<2x128xf32>
    %c3_i32 = arith.constant 3 : i32
    %41 = vector.broadcast %c3_i32 : i32 to vector<2x128xi32>
    %42 = arith.cmpi eq, %4, %41 : vector<2x128xi32>
    %43 = arith.select %42, %10, %38 : vector<2x128xi1>, vector<2x128xf32>
    %cst_19 = arith.constant 1.500000e+00 : f32
    %44 = vector.broadcast %cst_19 : f32 to vector<2x128xf32>
    %45 = arith.select %42, %44, %40 : vector<2x128xi1>, vector<2x128xf32>
    %c4_i32 = arith.constant 4 : i32
    %46 = vector.broadcast %c4_i32 : i32 to vector<2x128xi32>
    %47 = arith.cmpi eq, %4, %46 : vector<2x128xi32>
    %48 = arith.select %47, %12, %43 : vector<2x128xi1>, vector<2x128xf32>
    %cst_20 = arith.constant 2.000000e+00 : f32
    %49 = vector.broadcast %cst_20 : f32 to vector<2x128xf32>
    %50 = arith.select %47, %49, %45 : vector<2x128xi1>, vector<2x128xf32>
    %cst_21 = arith.constant 0.000000e+00 : f32
    %51 = vector.broadcast %cst_21 : f32 to vector<2x128xf32>
    %52 = arith.cmpf ogt, %50, %51 : vector<2x128xf32>
    %53 = arith.subf %28, %48 : vector<2x128xf32>
    %54 = arith.mulf %50, %53 : vector<2x128xf32>
    %cst_22 = arith.constant 0.000000e+00 : f32
    %55 = vector.broadcast %cst_22 : f32 to vector<2x128xf32>
    %56 = arith.select %52, %54, %55 : vector<2x128xi1>, vector<2x128xf32>
    %c0_23 = arith.constant 0 : index
    %c0_24 = arith.constant 0 : index
    %c0_25 = arith.constant 0 : index
    %57 = vector.load %arg4[%c0_23, %c0_24, %c0_25] : memref<1x1x128xf32, #tpu.memory_space<vmem>>, vector<1x1x128xf32>
    %cst_26 = arith.constant dense<0.000000e+00> : vector<128xf32>
    %58 = vector.multi_reduction <add>, %56, %cst_26 [0] : vector<2x128xf32> to vector<128xf32>
    %59 = vector.shape_cast %58 : vector<128xf32> to vector<1x128xf32>
    %60 = vector.shape_cast %59 : vector<1x128xf32> to vector<1x1x128xf32>
    %61 = arith.addf %57, %60 : vector<1x1x128xf32>
    %c0_27 = arith.constant 0 : index
    %c0_28 = arith.constant 0 : index
    %c0_29 = arith.constant 0 : index
    %62 = vector.load %arg4[%c0_27, %c0_28, %c0_29] : memref<1x1x128xf32, #tpu.memory_space<vmem>>, vector<1x1x128xf32>
    tpu.vector_store %arg4[%c0_27, %c0_28, %c0_29], %61 {strides = array<i32>} : memref<1x1x128xf32, #tpu.memory_space<vmem>>, vector<1x1x128xf32>,
    %c0_30 = arith.constant 0 : index
    %c0_31 = arith.constant 0 : index
    %c0_32 = arith.constant 0 : index
    %63 = vector.load %arg5[%c0_30, %c0_31, %c0_32] : memref<1x1x128xf32, #tpu.memory_space<vmem>>, vector<1x1x128xf32>
    %cst_33 = arith.constant dense<0.000000e+00> : vector<128xf32>
    %64 = vector.multi_reduction <add>, %50, %cst_33 [0] : vector<2x128xf32> to vector<128xf32>
    %65 = vector.shape_cast %64 : vector<128xf32> to vector<1x128xf32>
    %66 = vector.shape_cast %65 : vector<1x128xf32> to vector<1x1x128xf32>
    %67 = arith.addf %63, %66 : vector<1x1x128xf32>
    %c0_34 = arith.constant 0 : index
    %c0_35 = arith.constant 0 : index
    %c0_36 = arith.constant 0 : index
    %68 = vector.load %arg5[%c0_34, %c0_35, %c0_36] : memref<1x1x128xf32, #tpu.memory_space<vmem>>, vector<1x1x128xf32>
    tpu.vector_store %arg5[%c0_34, %c0_35, %c0_36], %67 {strides = array<i32>} : memref<1x1x128xf32, #tpu.memory_space<vmem>>, vector<1x1x128xf32>,
    return
  }
  func.func @transform_0(%arg0: i32, %arg1: i32) -> (i32, i32, i32, i32) {
    %c0_i32 = arith.constant 0 : i32
    %c0_i32_0 = arith.constant 0 : i32
    %c0_i32_1 = arith.constant 0 : i32
    return %arg0, %c0_i32, %arg1, %c0_i32_0 : i32, i32, i32, i32
  }
  func.func @transform_1(%arg0: i32, %arg1: i32) -> (i32, i32, i32) {
    %c0_i32 = arith.constant 0 : i32
    %c0_i32_0 = arith.constant 0 : i32
    return %arg0, %arg1, %c0_i32 : i32, i32, i32
  }
  func.func @transform_2(%arg0: i32, %arg1: i32) -> (i32, i32, i32) {
    %c0_i32 = arith.constant 0 : i32
    %c0_i32_0 = arith.constant 0 : i32
    %c0_i32_1 = arith.constant 0 : i32
    return %arg0, %c0_i32, %c0_i32_0 : i32, i32, i32
  }
  func.func @transform_3(%arg0: i32, %arg1: i32) -> (i32, i32, i32) {
    %c0_i32 = arith.constant 0 : i32
    %c0_i32_0 = arith.constant 0 : i32
    %c0_i32_1 = arith.constant 0 : i32
    return %arg0, %c0_i32, %c0_i32_0 : i32, i32, i32
  }
}

</mosaic_0001>

<llo_original>
// kernel: tpu_custom_call.1
$region0: #{tpu_custom_call.1}
  #allocation0 [shape = 'u32[]', space=smem, size = 0x4, offset = 0x4, fixed_abs, tag = 'smem constant byte address 0x4 - core index']
  #allocation1 [shape = 'u32[144,128]{1,0:T(1,128)}', space=vmem, size = 0x12000, scoped, tag = 'internal scratch']
  %s0 = inlined_call_operand.hbm [shape: f32[2,4,2,128], index: 0, kind: input, shape index: {}]
  %s1 = inlined_call_operand.hbm [shape: s32[2,2,128], index: 1, kind: input, shape index: {}]
  %s2 = inlined_call_operand.hbm [shape: f32[2,1,128], index: 2, kind: output, shape index: {0}]
  %s3 = inlined_call_operand.hbm [shape: f32[2,1,128], index: 3, kind: output, shape index: {1}]
  %4 = xla_tuple %s2, %s3
  %s5 = sld [smem:[#allocation0]]
  $region61: #{tpu_custom_call.1} parent=0
    _
  %s7 = ssub.s32 1, %s5
  %s8 = scalar_select 0, %s7, %s5
  $region1: #{tpu_custom_call.1} parent=0
    #allocation2 [shape = 'u8[8192]{0}', space=vmem, size = 0x2000, scoped, tag = 'input window, operand 0']
    #allocation3 [shape = 's32[2]{0}', space=sflag, size = 0x8, scoped, tag = 'scoped memory for tpu_custom_call.1']
    #allocation4 [shape = 's32[2]{0}', space=sflag, size = 0x8, scoped, tag = 'scoped memory for tpu_custom_call.1']
    #allocation5 [shape = 'u8[2048]{0}', space=vmem, size = 0x800, scoped, tag = 'input window, operand 1']
    #allocation6 [shape = 's32[2]{0}', space=sflag, size = 0x8, scoped, tag = 'scoped memory for tpu_custom_call.1']
    #allocation7 [shape = 'u8[1024]{0}', space=vmem, size = 0x400, scoped, tag = 'output window, operand 0']
    #allocation8 [shape = 'u8[1024]{0}', space=vmem, size = 0x400, scoped, tag = 'output window, operand 1']
    #allocation9 [shape = 's32[2]{0}', space=sflag, size = 0x8, scoped, tag = 'scoped memory for tpu_custom_call.1']
    %9 = vsyncpa [#allocation3], 0
    %s10 = scalar_lea.sflag [#allocation3], 1
    %11 = vsyncpa %s10, 0
    %12 = vsyncpa [#allocation6], 0
    %s13 = scalar_lea.sflag [#allocation6], 1
    %14 = vsyncpa %s13, 0
    %15 = vsyncpa [#allocation4], 0
    %s16 = scalar_lea.sflag [#allocation4], 1
    %17 = vsyncpa %s16, 0
    %18 = vsyncpa [#allocation9], 0
    %s19 = scalar_lea.sflag [#allocation9], 1
    %20 = vsyncpa %s19, 0
    loop: start=0, step=1, limit=4
    $region2: #{tpu_custom_call.1} parent=1 // loop_pre_header
      _
    $region3: #{tpu_custom_call.1} parent=1 // loop_header
      %s22 = sphi 0, %s26
      %p23 = scmp.ge.s32.totalorder %s22, 4
      %s29 = sphi 0, %s41
      %s30 = sphi 0, %s37
      %s31 = sphi 0, %s29
      %s32 = sphi 0, %s30
      %s33 = sphi 0, %s31
      %s34 = sphi 0, %s32
      %s46 = sphi 0, %s48
      %s49 = sphi 0, %s46
      %s50 = sphi 0, %s49
      %s66 = sphi 0, %s50
      %s74 = sphi 0, %s76
      %s77 = sphi 0, %s74
      %s78 = sphi 0, %s77
      %s94 = sphi 0, %s78
      %s100 = sphi 0, %s102
      %s103 = sphi 0, %s100
      %s104 = sphi 0, %s103
      %s120 = sphi 0, %s104
      %s126 = sphi 0, %s128
      %s129 = sphi 0, %s126
      %s130 = sphi 0, %s129
      %s146 = sphi 0, %s130
    $region4: #{tpu_custom_call.1} parent=1 // loop_header_branch
      %25 = sbr.rel (%p23) target = $region8
    $region5: #{tpu_custom_call.1} parent=1 // loop_body
      %s27 = ssub.s32 %s22, 1
      %s28 = ssub.s32 %s22, 2
      %s35 = sadd.s32 1, %s30
      %p36 = scmp.ge.s32.totalorder %s35, 1
      %s37 = scalar_select %p36, 0, %s35
      %s38 = sadd.s32 1, %s29
      %s39 = scalar_select %p36, %s38, %s29
      %p40 = scmp.ge.s32.totalorder %s39, 2
      %s41 = scalar_select %p40, 0, %s39
      %s42 = ssub.s32 %s29, %s41
      %s43 = ssub.s32 %s30, %s37
      %s44 = sor.u32 %s42, %s43
      %p45 = scmp.eq.s32.totalorder %s44, 0
      %s47 = sadd.s32 %s46, 1
      %s48 = scalar_select %p45, %s46, %s47
      %p51 = pneg %p45
      %p52 = scmp.eq.s32.totalorder %s22, 1
      %p53 = por %p51, %p52
      %p54 = scmp.ne.s32.totalorder %s46, %s49
      %p55 = scmp.eq.s32.totalorder %s22, 0
      %p56 = por %p54, %p55
      %p57 = scmp.ne.s32.totalorder %s46, %s49
      %p58 = scmp.eq.s32.totalorder %s27, 1
      %p59 = por %p57, %p58
      %p60 = scmp.ne.s32.totalorder %s49, %s50
      %p61 = scmp.eq.s32.totalorder %s27, 0
      %p62 = por %p60, %p61
      %p63 = scmp.ne.s32.totalorder %s49, %s50
      %p64 = scmp.eq.s32.totalorder %s28, 1
      %p65 = por %p63, %p64
      %p67 = scmp.ne.s32.totalorder %s50, %s66
      %p68 = scmp.eq.s32.totalorder %s28, 0
      %p69 = por %p67, %p68
      %s70 = ssub.s32 %s29, %s41
      %s71 = ssub.s32 %s30, %s37
      %s72 = sor.u32 %s70, %s71
      %p73 = scmp.eq.s32.totalorder %s72, 0
      %s75 = sadd.s32 %s74, 1
      %s76 = scalar_select %p73, %s74, %s75
      %p79 = pneg %p73
      %p80 = scmp.eq.s32.totalorder %s22, 1
      %p81 = por %p79, %p80
      %p82 = scmp.ne.s32.totalorder %s74, %s77
      %p83 = scmp.eq.s32.totalorder %s22, 0
      %p84 = por %p82, %p83
      %p85 = scmp.ne.s32.totalorder %s74, %s77
      %p86 = scmp.eq.s32.totalorder %s27, 1
      %p87 = por %p85, %p86
      %p88 = scmp.ne.s32.totalorder %s77, %s78
      %p89 = scmp.eq.s32.totalorder %s27, 0
      %p90 = por %p88, %p89
      %p91 = scmp.ne.s32.totalorder %s77, %s78
      %p92 = scmp.eq.s32.totalorder %s28, 1
      %p93 = por %p91, %p92
      %p95 = scmp.ne.s32.totalorder %s78, %s94
      %p96 = scmp.eq.s32.totalorder %s28, 0
      %p97 = por %p95, %p96
      %s98 = ssub.s32 %s29, %s41
      %p99 = scmp.eq.s32.totalorder %s98, 0
      %s101 = sadd.s32 %s100, 1
      %s102 = scalar_select %p99, %s100, %s101
      %p105 = pneg %p99
      %p106 = scmp.eq.s32.totalorder %s22, 1
      %p107 = por %p105, %p106
      %p108 = scmp.ne.s32.totalorder %s100, %s103
      %p109 = scmp.eq.s32.totalorder %s22, 0
      %p110 = por %p108, %p109
      %p111 = scmp.ne.s32.totalorder %s100, %s103
      %p112 = scmp.eq.s32.totalorder %s27, 1
      %p113 = por %p111, %p112
      %p114 = scmp.ne.s32.totalorder %s103, %s104
      %p115 = scmp.eq.s32.totalorder %s27, 0
      %p116 = por %p114, %p115
      %p117 = scmp.ne.s32.totalorder %s103, %s104
      %p118 = scmp.eq.s32.totalorder %s28, 1
      %p119 = por %p117, %p118
      %p121 = scmp.ne.s32.totalorder %s104, %s120
      %p122 = scmp.eq.s32.totalorder %s28, 0
      %p123 = por %p121, %p122
      %s124 = ssub.s32 %s29, %s41
      %p125 = scmp.eq.s32.totalorder %s124, 0
      %s127 = sadd.s32 %s126, 1
      %s128 = scalar_select %p125, %s126, %s127
      %p131 = pneg %p125
      %p132 = scmp.eq.s32.totalorder %s22, 1
      %p133 = por %p131, %p132
      %p134 = scmp.ne.s32.totalorder %s126, %s129
      %p135 = scmp.eq.s32.totalorder %s22, 0
      %p136 = por %p134, %p135
      %p137 = scmp.ne.s32.totalorder %s126, %s129
      %p138 = scmp.eq.s32.totalorder %s27, 1
      %p139 = por %p137, %p138
      %p140 = scmp.ne.s32.totalorder %s129, %s130
      %p141 = scmp.eq.s32.totalorder %s27, 0
      %p142 = por %p140, %p141
      %p143 = scmp.ne.s32.totalorder %s129, %s130
      %p144 = scmp.eq.s32.totalorder %s28, 1
      %p145 = por %p143, %p144
      %p147 = scmp.ne.s32.totalorder %s130, %s146
      %p148 = scmp.eq.s32.totalorder %s28, 0
      %p149 = por %p147, %p148
      %p150 = scmp.le.s32.totalorder 1, %s22
      %p151 = scmp.lt.s32.totalorder %s22, 3
      %p152 = pnand %p150, %p151
      %p153 = pneg %p152
      // Predicated region
      $region9: #{tpu_custom_call.1} parent=5 // pred_check
        _
      $region10: #{tpu_custom_call.1} parent=5 // pred_check_branch
        %155 = sbr.rel (%p152) target = $region12
      $region11: #{tpu_custom_call.1} parent=5 // pred_region
        %s156 = ssub.s32 %s22, 1
      $region12: #{tpu_custom_call.1} parent=5 // pred_fallthru
        _
      %p157 = scmp.lt.s32.totalorder %s22, 2
      // Predicated region
      $region13: #{tpu_custom_call.1} parent=5 // pred_check
        %p158 = pneg %p157
      $region14: #{tpu_custom_call.1} parent=5 // pred_check_branch
        %160 = sbr.rel (%p158) target = $region16
      $region15: #{tpu_custom_call.1} parent=5 // pred_region
        // Predicated region
        $region17: #{tpu_custom_call.1} parent=15 // pred_check
          %p161 = pneg %p56
        $region18: #{tpu_custom_call.1} parent=15 // pred_check_branch
          %163 = sbr.rel (%p161) target = $region20
        $region19: #{tpu_custom_call.1} parent=15 // pred_region
          %s164 = sand.u32 %s46, 1
          %s165 = scalar_lea.sflag [#allocation3], %s164
          %s166 = sand.u32 %s46, 1
          %s167 = smul.addr %s166, 8
          %s168 = scalar_lea.vmem [#allocation2], %s167
          %s170 = ssub.s32 128, 128
          %171 = vsyncadd %s165, %s170
          %s172 = smul.addr %s29, 4
          %s173 = sadd.s32 %s30, %s172
          %s174 = smul.addr %s173, 32
          %s175 = scalar_lea.hbm %s0, %s174
          %s176 = sshll.u32 %s168, 4
          %s177 = int_to_ptr.vmem [resolvable:$true] %s176
          %182 = dma.hbm_to_vmem [thread:$0]  %s175, 128, %s177, %s165, 32, 32, 2
        $region20: #{tpu_custom_call.1} parent=15 // pred_fallthru
          _
        // Predicated region
        $region21: #{tpu_custom_call.1} parent=15 // pred_check
          %p183 = pneg %p84
        $region22: #{tpu_custom_call.1} parent=15 // pred_check_branch
          %185 = sbr.rel (%p183) target = $region24
        $region23: #{tpu_custom_call.1} parent=15 // pred_region
          %s186 = sand.u32 %s74, 1
          %s187 = scalar_lea.sflag [#allocation6], %s186
          %s188 = sand.u32 %s74, 1
          %s189 = smul.addr %s188, 2
          %s190 = scalar_lea.vmem [#allocation5], %s189
          %s192 = ssub.s32 32, 32
          %193 = vsyncadd %s187, %s192
          %s194 = sadd.s32 %s30, %s29
          %s195 = smul.addr %s194, 32
          %s196 = scalar_lea.hbm %s1, %s195
          %s198 = sshll.u32 %s190, 4
          %s199 = int_to_ptr.vmem [resolvable:$true] %s198
          %201 = dma.hbm_to_vmem [thread:$0]  %s196, 32, %s199, %s187
        $region24: #{tpu_custom_call.1} parent=15 // pred_fallthru
          _
      $region16: #{tpu_custom_call.1} parent=5 // pred_fallthru
        _
      %p202 = scmp.le.s32.totalorder 1, %s22
      %p203 = scmp.lt.s32.totalorder %s22, 3
      %p204 = pnand %p202, %p203
      %p205 = pneg %p204
      // Predicated region
      $region25: #{tpu_custom_call.1} parent=5 // pred_check
        _
      $region26: #{tpu_custom_call.1} parent=5 // pred_check_branch
        %207 = sbr.rel (%p204) target = $region28
      $region27: #{tpu_custom_call.1} parent=5 // pred_region
        %s208 = ssub.s32 %s22, 1
        %s209 = sand.u32 %s49, 1
        %s210 = scalar_lea.sflag [#allocation3], %s209
        %s211 = sand.u32 %s49, 1
        %s212 = smul.addr %s211, 8
        %s213 = scalar_lea.vmem [#allocation2], %s212
        // Predicated region
        $region29: #{tpu_custom_call.1} parent=27 // pred_check
          %p214 = pneg %p62
        $region30: #{tpu_custom_call.1} parent=27 // pred_check_branch
          %216 = sbr.rel (%p214) target = $region32
        $region31: #{tpu_custom_call.1} parent=27 // pred_region
          %217 = dma.done %s210, 128
        $region32: #{tpu_custom_call.1} parent=27 // pred_fallthru
          _
        %s218 = sand.u32 %s77, 1
        %s219 = scalar_lea.sflag [#allocation6], %s218
        %s220 = sand.u32 %s77, 1
        %s221 = smul.addr %s220, 2
        %s222 = scalar_lea.vmem [#allocation5], %s221
        // Predicated region
        $region33: #{tpu_custom_call.1} parent=27 // pred_check
          %p223 = pneg %p90
        $region34: #{tpu_custom_call.1} parent=27 // pred_check_branch
          %225 = sbr.rel (%p223) target = $region36
        $region35: #{tpu_custom_call.1} parent=27 // pred_region
          %226 = dma.done %s219, 32
        $region36: #{tpu_custom_call.1} parent=27 // pred_fallthru
          _
        %s227 = sand.u32 %s49, 1
        %s228 = scalar_lea.sflag [#allocation3], %s227
        %s229 = sand.u32 %s49, 1
        %s230 = smul.addr %s229, 8
        %s231 = scalar_lea.vmem [#allocation2], %s230
        %p232 = pneg %p62
        %p233 = pneg %p59
        %s234 = sand.u32 %s77, 1
        %s235 = scalar_lea.sflag [#allocation6], %s234
        %s236 = sand.u32 %s77, 1
        %s237 = smul.addr %s236, 2
        %s238 = scalar_lea.vmem [#allocation5], %s237
        %p239 = pneg %p90
        %p240 = pneg %p87
        %p241 = pneg %p116
        %p242 = pneg %p113
        %s243 = sand.u32 %s103, 1
        %s244 = scalar_lea.sflag [#allocation4], %s243
        %s245 = sand.u32 %s103, 1
        %s246 = scalar_lea.vmem [#allocation7], %s245
        %p247 = pneg %p142
        %p248 = pneg %p139
        %s249 = sand.u32 %s129, 1
        %s250 = scalar_lea.sflag [#allocation9], %s249
        %s251 = sand.u32 %s129, 1
        %s252 = scalar_lea.vmem [#allocation8], %s251
        %p253 = scmp.eq.s32.totalorder %s32, 0
        // Predicated region
        $region37: #{tpu_custom_call.1} parent=27 // pred_check
          %p254 = pneg %p253
        $region38: #{tpu_custom_call.1} parent=27 // pred_check_branch
          %256 = sbr.rel (%p254) target = $region40
        $region39: #{tpu_custom_call.1} parent=27 // pred_region
          %257 = vst [vmem:[%s246] sm:$0x1] 0.0
          %258 = vst [vmem:[%s252] sm:$0x1] 0.0
        $region40: #{tpu_custom_call.1} parent=27 // pred_fallthru
          _
        %v259 = vld [vmem:[%s222] sm:$0x3]
        %v260 = vld [vmem:[%s213] sm:$0x3]
        %s261 = scalar_lea.vmem %s213, 2 [#allocation2]
        %v262 = vld [vmem:[%s261] sm:$0x3]
        %s263 = scalar_lea.vmem %s213, 4 [#allocation2]
        %v264 = vld [vmem:[%s263] sm:$0x3]
        %s265 = scalar_lea.vmem %s213, 6 [#allocation2]
        %v266 = vld [vmem:[%s265] sm:$0x3]
        %v267 = vmax.f32 %v260, %v262
        %v268 = vmax.f32 %v267, %v264
        %v269 = vmax.f32 %v268, %v266
        %v270 = vsub.f32 %v260, %v269
        %v271 = vmul.f32 %v270, 1.442695
        %v272 = vpow.pop %v271
        %v273 = vsub.f32 %v262, %v269
        %v274 = vmul.f32 %v273, 1.442695
        %v275 = vpow.pop %v274
        %v276 = vadd.f32 %v272, %v275
        %v277 = vsub.f32 %v264, %v269
        %v278 = vmul.f32 %v277, 1.442695
        %v279 = vpow.pop %v278
        %v280 = vadd.f32 %v276, %v279
        %v281 = vsub.f32 %v266, %v269
        %v282 = vmul.f32 %v281, 1.442695
        %v283 = vpow.pop %v282
        %v284 = vadd.f32 %v280, %v283
        %v285 = vlog2.pop %v284
        %v286 = vmul.f32 %v285, 0.6931472
        %v287 = vadd.f32 %v269, %v286
        %vm288 = vcmp.eq.s32.totalorder %v259, 1
        %v289 = vsel %vm288, %v260, 0.0
        %v290 = vsel %vm288, 0.5, 0.0
        %vm291 = vcmp.eq.s32.totalorder %v259, 2
        %v292 = vsel %vm291, %v262, %v289
        %v293 = vsel %vm291, 1.0, %v290
        %vm294 = vcmp.eq.s32.totalorder %v259, 3
        %v295 = vsel %vm294, %v264, %v292
        %v296 = vsel %vm294, 1.5, %v293
        %vm297 = vcmp.eq.s32.totalorder %v259, 4
        %v298 = vsel %vm297, %v266, %v295
        %v299 = vsel %vm297, 2.0, %v296
        %vm300 = vcmp.gt.f32.partialorder %v299, 0.0
        %v301 = vsub.f32 %v287, %v298
        %v302 = vmul.f32 %v299, %v301
        %v303 = vsel %vm300, %v302, 0.0
        %v304 = vld [vmem:[%s246] sm:$0x1]
        %vm305 = vcmask 1041408
        %v306 = vsel %vm305, %v303, 0.0
        %v307 = vrot.slane %v306, 4
        %v308 = vadd.f32 %v306, %v307
        %v309 = vrot.slane %v308, 2
        %v310 = vadd.f32 %v308, %v309
        %v311 = vrot.slane %v310, 1
        %v312 = vadd.f32 %v310, %v311
        %v313 = vadd.f32 %v304, %v312
        %314 = vst [vmem:[%s246] sm:$0x1] %v313
        %v315 = vld [vmem:[%s252] sm:$0x1]
        %v316 = vsel %vm305, %v299, 0.0
        %v317 = vrot.slane %v316, 4
        %v318 = vadd.f32 %v316, %v317
        %v319 = vrot.slane %v318, 2
        %v320 = vadd.f32 %v318, %v319
        %v321 = vrot.slane %v320, 1
        %v322 = vadd.f32 %v320, %v321
        %v323 = vadd.f32 %v315, %v322
        %324 = vst [vmem:[%s252] sm:$0x1] %v323
        %s325 = sand.u32 %s103, 1
        %s326 = scalar_lea.sflag [#allocation4], %s325
        %s327 = sand.u32 %s103, 1
        %s328 = scalar_lea.vmem [#allocation7], %s327
        %s329 = sand.u32 %s129, 1
        %s330 = scalar_lea.sflag [#allocation9], %s329
        %s331 = sand.u32 %s129, 1
        %s332 = scalar_lea.vmem [#allocation8], %s331
        // Predicated region
        $region41: #{tpu_custom_call.1} parent=27 // pred_check
          %p333 = pneg %p113
        $region42: #{tpu_custom_call.1} parent=27 // pred_check_branch
          %335 = sbr.rel (%p333) target = $region44
        $region43: #{tpu_custom_call.1} parent=27 // pred_region
          %s337 = ssub.s32 16, 16
          %338 = vsyncadd %s326, %s337
          %s339 = smul.addr %s31, 16
          %s340 = scalar_lea.hbm %s2, %s339
          %s342 = sshll.u32 %s328, 4
          %s343 = int_to_ptr.vmem [resolvable:$true] %s342
          %345 = dma.vmem_to_hbm [thread:$0]  %s343, 16, %s340, %s326
        $region44: #{tpu_custom_call.1} parent=27 // pred_fallthru
          _
        // Predicated region
        $region45: #{tpu_custom_call.1} parent=27 // pred_check
          %p346 = pneg %p139
        $region46: #{tpu_custom_call.1} parent=27 // pred_check_branch
          %348 = sbr.rel (%p346) target = $region48
        $region47: #{tpu_custom_call.1} parent=27 // pred_region
          %s350 = ssub.s32 16, 16
          %351 = vsyncadd %s330, %s350
          %s352 = smul.addr %s31, 16
          %s353 = scalar_lea.hbm %s3, %s352
          %s355 = sshll.u32 %s332, 4
          %s356 = int_to_ptr.vmem [resolvable:$true] %s355
          %358 = dma.vmem_to_hbm [thread:$0]  %s356, 16, %s353, %s330
        $region48: #{tpu_custom_call.1} parent=27 // pred_fallthru
          _
      $region28: #{tpu_custom_call.1} parent=5 // pred_fallthru
        _
      %p359 = scmp.le.s32.totalorder 2, %s22
      // Predicated region
      $region49: #{tpu_custom_call.1} parent=5 // pred_check
        %p360 = pneg %p359
      $region50: #{tpu_custom_call.1} parent=5 // pred_check_branch
        %362 = sbr.rel (%p360) target = $region52
      $region51: #{tpu_custom_call.1} parent=5 // pred_region
        %s363 = ssub.s32 %s22, 2
        // Predicated region
        $region53: #{tpu_custom_call.1} parent=51 // pred_check
          %p364 = pneg %p119
        $region54: #{tpu_custom_call.1} parent=51 // pred_check_branch
          %366 = sbr.rel (%p364) target = $region56
        $region55: #{tpu_custom_call.1} parent=51 // pred_region
          %s367 = sand.u32 %s104, 1
          %s368 = scalar_lea.sflag [#allocation4], %s367
          %s369 = sand.u32 %s104, 1
          %s370 = scalar_lea.vmem [#allocation7], %s369
          %371 = dma.done %s368, 16
        $region56: #{tpu_custom_call.1} parent=51 // pred_fallthru
          _
        // Predicated region
        $region57: #{tpu_custom_call.1} parent=51 // pred_check
          %p372 = pneg %p145
        $region58: #{tpu_custom_call.1} parent=51 // pred_check_branch
          %374 = sbr.rel (%p372) target = $region60
        $region59: #{tpu_custom_call.1} parent=51 // pred_region
          %s375 = sand.u32 %s130, 1
          %s376 = scalar_lea.sflag [#allocation9], %s375
          %s377 = sand.u32 %s130, 1
          %s378 = scalar_lea.vmem [#allocation8], %s377
          %379 = dma.done %s376, 16
        $region60: #{tpu_custom_call.1} parent=51 // pred_fallthru
          _
      $region52: #{tpu_custom_call.1} parent=5 // pred_fallthru
        _
    $region6: #{tpu_custom_call.1} parent=1 // loop_footer
      %s26 = sadd.s32 1, %s22
    $region7: #{tpu_custom_call.1} parent=1 // loop_footer_branch
      %21 = sbr.rel target = $region3
    $region8: #{tpu_custom_call.1} parent=1 // loop_exit
      _
    %380 = vsyncpa [#allocation3], 1
    %s381 = scalar_lea.sflag [#allocation3], 1
    %382 = vsyncpa %s381, 1
    %383 = vsyncpa [#allocation6], 1
    %s384 = scalar_lea.sflag [#allocation6], 1
    %385 = vsyncpa %s384, 1
    %386 = vsyncpa [#allocation4], 1
    %s387 = scalar_lea.sflag [#allocation4], 1
    %388 = vsyncpa %s387, 1
    %389 = vsyncpa [#allocation9], 1
    %s390 = scalar_lea.sflag [#allocation9], 1
    %391 = vsyncpa %s390, 1

</llo_original>
